<compile_context>
chip_gen: v5e
topology: v5e:2x2
jax: 0.10.0
libtpu: 0.0.40
codegen_flags: <defaults>
</compile_context>

<pallas_src>
import functools

import jax
import jax.numpy as jnp
import numpy as np
from jax import lax
from jax.experimental import pallas as pl
from jax.experimental.pallas import tpu as pltpu


# ----------------------------------------------------------------------------
# Fused kernel (all variables in one body)
# ----------------------------------------------------------------------------
def _make_fused_kernel(num_vars, Nx, Ny, hidden, var_cfgs):
    """var_cfgs: per-variable static tuple
       (has_nn, D_eff, p_exp, cauchy_mult,
        dirichlet_bool, dirichlet_val, neumann_bool, neumann_val, cauchy_bool)
    """
    n_nn = sum(1 for c in var_cfgs if c[0])

    def kernel(*refs):
        t_ref, u_all_ref, u0_ref = refs[0], refs[1], refs[2]
        nn_refs = refs[3:3 + 4 * n_nn]
        out_ref = refs[3 + 4 * n_nn]

        u = u_all_ref[0]                                # [Nx, Ny]; model always uses u[0]
        t_is_zero = t_ref[0] == jnp.float32(0.0)        # runtime scalar from SMEM

        # Shared across variables: wrapped neighbor planes (XLU rotates, no
        # slice/concat copies) + edge masks.  Wrapped rows/cols are overwritten
        # by the boundary flux below.
        nbr = (
            pltpu.roll(u, shift=1, axis=0),        # u[i-1, j]  (left  neighbor)
            pltpu.roll(u, shift=Nx - 1, axis=0),   # u[i+1, j]  (right neighbor)
            pltpu.roll(u, shift=1, axis=1),        # u[i, j-1]  (top   neighbor)
            pltpu.roll(u, shift=Ny - 1, axis=1),   # u[i, j+1]  (bottom neighbor)
        )
        row = lax.broadcasted_iota(jnp.int32, (Nx, Ny), 0)
        col = lax.broadcasted_iota(jnp.int32, (Nx, Ny), 1)
        at_edge = (row == 0, row == Nx - 1, col == 0, col == Ny - 1)

        nn_i = 0
        for v, (has_nn, D_eff, p_exp, cauchy_mult,
                dir_b, dir_v, neu_b, neu_v, cau_b) in enumerate(var_cfgs):
            # ---- per-cell flux multiplier, folded with D_eff * 10**p_exp ----
            if has_nn:
                w1, b1, w2, b2 = nn_refs[4 * nn_i:4 * nn_i + 4]
                nn_i += 1
                acc = jnp.full((Nx, Ny), b2[0], jnp.float32)
                for k in range(hidden):              # input dim is 1 -> unrolled
                    acc = acc + w2[k] * jnp.tanh(w1[k] * u + b1[k])
                sig = 0.5 * (1.0 + jnp.tanh(0.5 * acc))   # sigmoid via tanh (EUP)
                fm_d = sig * jnp.float32(D_eff * (10.0 ** p_exp))
            else:
                fm_d = jnp.float32(D_eff)             # flux_mult == 1 everywhere

            u0v = u0_ref[v] if any(cau_b) else None

            flux = None
            for side in range(4):
                # interior flux with stencil (1, -1): (neighbor - u) * D_eff*fm
                inner = (nbr[side] - u) * fm_d
                if dir_b[side]:
                    edge = (jnp.float32(dir_v[side]) - u) * fm_d
                    d = jnp.where(at_edge[side], edge, inner)
                elif neu_b[side]:
                    d = jnp.where(at_edge[side], jnp.float32(neu_v[side]), inner)
                elif cau_b[side]:
                    cv = jnp.where(t_is_zero, u0v,
                                   (u - u0v) * jnp.float32(cauchy_mult * D_eff))
                    edge = (cv - u) * fm_d
                    d = jnp.where(at_edge[side], edge, inner)
                else:
                    raise ValueError(
                        f"no boundary condition specified for var {v}, side {side}")
                flux = d if flux is None else flux + d

            out_ref[v] = flux

    return kernel


@functools.lru_cache(maxsize=None)
def _build_net_model_fn(num_vars, Nx, Ny, hidden, cfg_key):
    """Builds (and caches) the fused, jitted pallas_call for one config."""
    kernel = _make_fused_kernel(num_vars, Nx, Ny, hidden, cfg_key)
    n_nn = sum(1 for c in cfg_key if c[0])
    vmem = pl.BlockSpec(memory_space=pltpu.MemorySpace.VMEM)
    smem = pl.BlockSpec(memory_space=pltpu.MemorySpace.SMEM)
    call = pl.pallas_call(
        kernel,
        out_shape=jax.ShapeDtypeStruct((num_vars, Nx, Ny), jnp.float32),
        in_specs=[smem, vmem, vmem] + [smem] * (4 * n_nn),
        out_specs=vmem,
    )
    return jax.jit(call)


def _hashable_cfg(cfg, num_vars, has_nn):
    return tuple(
        (bool(has_nn[i]),
         float(cfg["D_eff"][i]),
         float(cfg["p_exp_flux"][i]),
         float(cfg["cauchy_mult"][i]),
         tuple(bool(b) for b in cfg["dirichlet_bool"][i]),
         tuple(float(x) for x in cfg["dirichlet_val"][i]),
         tuple(bool(b) for b in cfg["neumann_bool"][i]),
         tuple(float(x) for x in cfg["neumann_val"][i]),
         tuple(bool(b) for b in cfg["cauchy_bool"][i]))
        for i in range(num_vars))


# ----------------------------------------------------------------------------
# Net_Model equivalent
# ----------------------------------------------------------------------------
class NetModelPallas:
    """JAX/Pallas equivalent of Net_Model(u0, cfg, ret_funs).forward(t, u)."""

    def __init__(self, u0, cfg, nn_params_list, *, hidden):
        self.u0 = jnp.asarray(u0, jnp.float32)            # [num_vars, Nx, Ny]
        self.num_vars, self.Nx, self.Ny = self.u0.shape
        assert len(nn_params_list) == self.num_vars

        has_nn, flat = [], []
        for p in nn_params_list:
            if p is None:
                has_nn.append(False)
            else:
                has_nn.append(True)
                w1, b1, w2, b2 = p
                flat += [jnp.asarray(w1, jnp.float32).reshape(-1),
                         jnp.asarray(b1, jnp.float32).reshape(-1),
                         jnp.asarray(w2, jnp.float32).reshape(-1),
                         jnp.asarray(b2, jnp.float32).reshape(-1)]
        self._nn_flat = tuple(flat)

        cfg_key = _hashable_cfg(cfg, self.num_vars, has_nn)
        # Built once; cached across instances with identical (shape, config).
        self._fn = _build_net_model_fn(self.num_vars, self.Nx, self.Ny,
                                       hidden, cfg_key)

    def __call__(self, t, u):
        t_arr = jnp.asarray([t], jnp.float32)             # runtime scalar -> SMEM
        return self._fn(t_arr, u, self.u0, *self._nn_flat)  # [num_vars, Nx, Ny]


# ----------------------------------------------------------------------------
# Reference (literal NumPy translation of torch compute_flux, default config)
# ----------------------------------------------------------------------------
def compute_flux_ref(u, u0, fm, D_eff, cauchy_mult, dirichlet_val0, t):
    s0, s1 = 1.0, -1.0
    Nx, Ny = u.shape
    left_b = (s0 * dirichlet_val0 + s1 * u[0, :])[None, :] * D_eff * fm[0, :]
    left_n = (s0 * u[:-1, :] + s1 * u[1:, :]) * D_eff * fm[1:, :]
    left = np.concatenate([left_b, left_n], axis=0)
    if t == 0.0:
        cv = u0[-1, :]
    else:
        cv = (u[-1, :] - u0[-1, :]) * cauchy_mult * D_eff
    right_b = (s0 * cv + s1 * u[-1, :])[None, :] * D_eff * fm[-1, :]
    right_n = (s0 * u[1:, :] + s1 * u[:-1, :]) * D_eff * fm[:-1, :]
    right = np.concatenate([right_n, right_b], axis=0)
    top_b = np.zeros((Nx, 1), np.float32)
    top_n = (s0 * u[:, :-1] + s1 * u[:, 1:]) * D_eff * fm[:, 1:]
    top = np.concatenate([top_b, top_n], axis=1)
    bot_b = np.zeros((Nx, 1), np.float32)
    bot_n = (s0 * u[:, 1:] + s1 * u[:, :-1]) * D_eff * fm[:, :-1]
    bot = np.concatenate([bot_n, bot_b], axis=1)
    return left + right + top + bot


# ----------------------------------------------------------------------------
if __name__ == "__main__":
    NUM_VARS, NX, NY, HIDDEN = 2, 16, 128, 32

    key = jax.random.PRNGKey(0)
    k1, k2, k3, k4, k5, k6 = jax.random.split(key, 6)
    u0 = jax.random.uniform(k1, (NUM_VARS, NX, NY), jnp.float32)
    u = jax.random.uniform(k2, (NUM_VARS, NX, NY), jnp.float32)

    # Coefficient MLP params for variable 1 (ret_funs[0] = None, ret_funs[1] = MLP).
    w1 = jax.random.normal(k3, (HIDDEN,), jnp.float32) * 0.5
    b1 = jax.random.normal(k4, (HIDDEN,), jnp.float32) * 0.1
    w2 = jax.random.normal(k5, (HIDDEN,), jnp.float32) * 0.5
    b2 = jax.random.normal(k6, (1,), jnp.float32) * 0.1
    nn_params = [None, (w1, b1, w2, b2)]

    # FinnParams defaults, with Nx matched to the grid.
    X, D, solubility = 1.0, 0.0005, 1.0
    dx = X / (NX + 1)
    cfg = dict(
        dirichlet_bool=[[True, False, False, False]] * 2,
        neumann_bool=[[False, False, True, True]] * 2,
        cauchy_bool=[[False, True, False, False]] * 2,
        dirichlet_val=[[solubility, 0.0, 0.0, 0.0]] * 2,
        neumann_val=[[0.0, 0.0, 0.0, 0.0]] * 2,
        cauchy_mult=[dx, dx],
        D_eff=[D / dx ** 2, 0.25],
        p_exp_flux=[0.0, 0.0],
    )

    model = NetModelPallas(u0, cfg, nn_params, hidden=HIDDEN)

    u_np = np.asarray(u, np.float32)
    u0_np = np.asarray(u0, np.float32)

    def ref_fm(i):
        if nn_params[i] is None:
            return np.ones((NX, NY), np.float32)
        w1n, b1n, w2n, b2n = [np.asarray(p, np.float32) for p in nn_params[i]]
        acc = np.full((NX, NY), b2n[0], np.float32)
        for kk in range(HIDDEN):
            acc = acc + w2n[kk] * np.tanh(w1n[kk] * u_np[0] + b1n[kk])
        return (1.0 / (1.0 + np.exp(-acc))).astype(np.float32) * (10.0 ** cfg["p_exp_flux"][i])

    # Both t != 0 and t == 0 exercise the two Cauchy branches of the SAME
    # compiled kernel (t is a runtime SMEM scalar -> no retrace/recompile).
    for t in (0.5, 0.0):
        dudt = jax.block_until_ready(model(t, u))
        assert dudt.shape == (NUM_VARS, NX, NY)
        for i in range(NUM_VARS):
            ref = compute_flux_ref(u_np[0], u0_np[i], ref_fm(i),
                                   cfg["D_eff"][i], cfg["cauchy_mult"][i],
                                   cfg["dirichlet_val"][i][0], t)
            np.testing.assert_allclose(np.asarray(dudt[i]), ref,
                                       rtol=2e-3, atol=1e-5)

    print("KERNEL_OK")
</pallas_src>

<mosaic_0001>
module attributes {stable_mosaic.version = 11 : i64} {
  func.func @kernel(%arg0: memref<1xf32, #tpu.memory_space<smem>>, %arg1: memref<2x16x128xf32, #tpu.memory_space<vmem>>, %arg2: memref<2x16x128xf32, #tpu.memory_space<vmem>>, %arg3: memref<32xf32, #tpu.memory_space<smem>>, %arg4: memref<32xf32, #tpu.memory_space<smem>>, %arg5: memref<32xf32, #tpu.memory_space<smem>>, %arg6: memref<1xf32, #tpu.memory_space<smem>>, %arg7: memref<2x16x128xf32, #tpu.memory_space<vmem>>) attributes {dimension_semantics = [], scalar_prefetch = 0 : i64, scratch_operands = 0 : i64, tpu.core_type = #tpu.core_type<tc>} {
    %c0 = arith.constant 0 : index
    %c0_0 = arith.constant 0 : index
    %c0_1 = arith.constant 0 : index
    %0 = vector.load %arg1[%c0, %c0_0, %c0_1] : memref<2x16x128xf32, #tpu.memory_space<vmem>>, vector<1x16x128xf32>
    %1 = vector.shape_cast %0 : vector<1x16x128xf32> to vector<16x128xf32>
    %c0_2 = arith.constant 0 : index
    %2 = memref.load %arg0[%c0_2] : memref<1xf32, #tpu.memory_space<smem>>
    %cst = arith.constant 0.000000e+00 : f32
    %3 = arith.cmpf oeq, %2, %cst : f32
    %c1_i32 = arith.constant 1 : i32
    %4 = tpu.dynamic_rotate %1 by %c1_i32 dim 0 : vector<16x128xf32>, i32 -> vector<16x128xf32>
    %c15_i32 = arith.constant 15 : i32
    %5 = tpu.dynamic_rotate %1 by %c15_i32 dim 0 : vector<16x128xf32>, i32 -> vector<16x128xf32>
    %c1_i32_3 = arith.constant 1 : i32
    %6 = tpu.dynamic_rotate %1 by %c1_i32_3 dim 1 : vector<16x128xf32>, i32 -> vector<16x128xf32>
    %c127_i32 = arith.constant 127 : i32
    %7 = tpu.dynamic_rotate %1 by %c127_i32 dim 1 : vector<16x128xf32>, i32 -> vector<16x128xf32>
    %8 = tpu.iota {dimensions = array<i32: 0>} : vector<16x128xi32>
    %9 = tpu.iota {dimensions = array<i32: 1>} : vector<16x128xi32>
    %c0_i32 = arith.constant 0 : i32
    %10 = vector.broadcast %c0_i32 : i32 to vector<16x128xi32>
    %11 = arith.cmpi eq, %8, %10 : vector<16x128xi32>
    %c15_i32_4 = arith.constant 15 : i32
    %12 = vector.broadcast %c15_i32_4 : i32 to vector<16x128xi32>
    %13 = arith.cmpi eq, %8, %12 : vector<16x128xi32>
    %c0_i32_5 = arith.constant 0 : i32
    %14 = vector.broadcast %c0_i32_5 : i32 to vector<16x128xi32>
    %15 = arith.cmpi eq, %9, %14 : vector<16x128xi32>
    %c127_i32_6 = arith.constant 127 : i32
    %16 = vector.broadcast %c127_i32_6 : i32 to vector<16x128xi32>
    %17 = arith.cmpi eq, %9, %16 : vector<16x128xi32>
    %c0_7 = arith.constant 0 : index
    %c0_8 = arith.constant 0 : index
    %c0_9 = arith.constant 0 : index
    %18 = vector.load %arg2[%c0_7, %c0_8, %c0_9] : memref<2x16x128xf32, #tpu.memory_space<vmem>>, vector<1x16x128xf32>
    %19 = vector.shape_cast %18 : vector<1x16x128xf32> to vector<16x128xf32>
    %20 = arith.subf %4, %1 : vector<16x128xf32>
    %cst_10 = arith.constant 1.445000e-01 : f32
    %21 = vector.broadcast %cst_10 : f32 to vector<16x128xf32>
    %22 = arith.mulf %20, %21 : vector<16x128xf32>
    %cst_11 = arith.constant 1.000000e+00 : f32
    %23 = vector.broadcast %cst_11 : f32 to vector<16x128xf32>
    %24 = arith.subf %23, %1 : vector<16x128xf32>
    %cst_12 = arith.constant 1.445000e-01 : f32
    %25 = vector.broadcast %cst_12 : f32 to vector<16x128xf32>
    %26 = arith.mulf %24, %25 : vector<16x128xf32>
    %27 = arith.select %11, %26, %22 : vector<16x128xi1>, vector<16x128xf32>
    %28 = arith.subf %5, %1 : vector<16x128xf32>
    %cst_13 = arith.constant 1.445000e-01 : f32
    %29 = vector.broadcast %cst_13 : f32 to vector<16x128xf32>
    %30 = arith.mulf %28, %29 : vector<16x128xf32>
    %31 = arith.subf %1, %19 : vector<16x128xf32>
    %cst_14 = arith.constant 8.500000e-03 : f32
    %32 = vector.broadcast %cst_14 : f32 to vector<16x128xf32>
    %33 = arith.mulf %31, %32 : vector<16x128xf32>
    %34 = arith.select %3, %19, %33 : vector<16x128xf32>
    %35 = arith.subf %34, %1 : vector<16x128xf32>
    %cst_15 = arith.constant 1.445000e-01 : f32
    %36 = vector.broadcast %cst_15 : f32 to vector<16x128xf32>
    %37 = arith.mulf %35, %36 : vector<16x128xf32>
    %38 = arith.select %13, %37, %30 : vector<16x128xi1>, vector<16x128xf32>
    %39 = arith.addf %27, %38 : vector<16x128xf32>
    %40 = arith.subf %6, %1 : vector<16x128xf32>
    %cst_16 = arith.constant 1.445000e-01 : f32
    %41 = vector.broadcast %cst_16 : f32 to vector<16x128xf32>
    %42 = arith.mulf %40, %41 : vector<16x128xf32>
    %cst_17 = arith.constant 0.000000e+00 : f32
    %43 = vector.broadcast %cst_17 : f32 to vector<16x128xf32>
    %44 = arith.select %15, %43, %42 : vector<16x128xi1>, vector<16x128xf32>
    %45 = arith.addf %39, %44 : vector<16x128xf32>
    %46 = arith.subf %7, %1 : vector<16x128xf32>
    %cst_18 = arith.constant 1.445000e-01 : f32
    %47 = vector.broadcast %cst_18 : f32 to vector<16x128xf32>
    %48 = arith.mulf %46, %47 : vector<16x128xf32>
    %cst_19 = arith.constant 0.000000e+00 : f32
    %49 = vector.broadcast %cst_19 : f32 to vector<16x128xf32>
    %50 = arith.select %17, %49, %48 : vector<16x128xi1>, vector<16x128xf32>
    %51 = arith.addf %45, %50 : vector<16x128xf32>
    %c0_20 = arith.constant 0 : index
    %c0_21 = arith.constant 0 : index
    %c0_22 = arith.constant 0 : index
    %52 = vector.load %arg7[%c0_20, %c0_21, %c0_22] : memref<2x16x128xf32, #tpu.memory_space<vmem>>, vector<1x16x128xf32>
    %53 = vector.shape_cast %52 : vector<1x16x128xf32> to vector<16x128xf32>
    %54 = vector.shape_cast %51 : vector<16x128xf32> to vector<1x16x128xf32>
    tpu.vector_store %arg7[%c0_20, %c0_21, %c0_22], %54 {strides = array<i32>} : memref<2x16x128xf32, #tpu.memory_space<vmem>>, vector<1x16x128xf32>,
    %c0_23 = arith.constant 0 : index
    %55 = memref.load %arg6[%c0_23] : memref<1xf32, #tpu.memory_space<smem>>
    %56 = vector.broadcast %55 : f32 to vector<16x128xf32>
    %c0_24 = arith.constant 0 : index
    %57 = memref.load %arg5[%c0_24] : memref<32xf32, #tpu.memory_space<smem>>
    %c0_25 = arith.constant 0 : index
    %58 = memref.load %arg3[%c0_25] : memref<32xf32, #tpu.memory_space<smem>>
    %59 = vector.broadcast %58 : f32 to vector<16x128xf32>
    %60 = arith.mulf %59, %1 : vector<16x128xf32>
    %c0_26 = arith.constant 0 : index
    %61 = memref.load %arg4[%c0_26] : memref<32xf32, #tpu.memory_space<smem>>
    %62 = vector.broadcast %61 : f32 to vector<16x128xf32>
    %63 = arith.addf %60, %62 : vector<16x128xf32>
    %64 = math.tanh %63 : vector<16x128xf32>
    %65 = vector.broadcast %57 : f32 to vector<16x128xf32>
    %66 = arith.mulf %65, %64 : vector<16x128xf32>
    %67 = arith.addf %56, %66 : vector<16x128xf32>
    %c1 = arith.constant 1 : index
    %68 = memref.load %arg5[%c1] : memref<32xf32, #tpu.memory_space<smem>>
    %c1_27 = arith.constant 1 : index
    %69 = memref.load %arg3[%c1_27] : memref<32xf32, #tpu.memory_space<smem>>
    %70 = vector.broadcast %69 : f32 to vector<16x128xf32>
    %71 = arith.mulf %70, %1 : vector<16x128xf32>
    %c1_28 = arith.constant 1 : index
    %72 = memref.load %arg4[%c1_28] : memref<32xf32, #tpu.memory_space<smem>>
    %73 = vector.broadcast %72 : f32 to vector<16x128xf32>
    %74 = arith.addf %71, %73 : vector<16x128xf32>
    %75 = math.tanh %74 : vector<16x128xf32>
    %76 = vector.broadcast %68 : f32 to vector<16x128xf32>
    %77 = arith.mulf %76, %75 : vector<16x128xf32>
    %78 = arith.addf %67, %77 : vector<16x128xf32>
    %c2 = arith.constant 2 : index
    %79 = memref.load %arg5[%c2] : memref<32xf32, #tpu.memory_space<smem>>
    %c2_29 = arith.constant 2 : index
    %80 = memref.load %arg3[%c2_29] : memref<32xf32, #tpu.memory_space<smem>>
    %81 = vector.broadcast %80 : f32 to vector<16x128xf32>
    %82 = arith.mulf %81, %1 : vector<16x128xf32>
    %c2_30 = arith.constant 2 : index
    %83 = memref.load %arg4[%c2_30] : memref<32xf32, #tpu.memory_space<smem>>
    %84 = vector.broadcast %83 : f32 to vector<16x128xf32>
    %85 = arith.addf %82, %84 : vector<16x128xf32>
    %86 = math.tanh %85 : vector<16x128xf32>
    %87 = vector.broadcast %79 : f32 to vector<16x128xf32>
    %88 = arith.mulf %87, %86 : vector<16x128xf32>
    %89 = arith.addf %78, %88 : vector<16x128xf32>
    %c3 = arith.constant 3 : index
    %90 = memref.load %arg5[%c3] : memref<32xf32, #tpu.memory_space<smem>>
    %c3_31 = arith.constant 3 : index
    %91 = memref.load %arg3[%c3_31] : memref<32xf32, #tpu.memory_space<smem>>
    %92 = vector.broadcast %91 : f32 to vector<16x128xf32>
    %93 = arith.mulf %92, %1 : vector<16x128xf32>
    %c3_32 = arith.constant 3 : index
    %94 = memref.load %arg4[%c3_32] : memref<32xf32, #tpu.memory_space<smem>>
    %95 = vector.broadcast %94 : f32 to vector<16x128xf32>
    %96 = arith.addf %93, %95 : vector<16x128xf32>
    %97 = math.tanh %96 : vector<16x128xf32>
    %98 = vector.broadcast %90 : f32 to vector<16x128xf32>
    %99 = arith.mulf %98, %97 : vector<16x128xf32>
    %100 = arith.addf %89, %99 : vector<16x128xf32>
    %c4 = arith.constant 4 : index
    %101 = memref.load %arg5[%c4] : memref<32xf32, #tpu.memory_space<smem>>
    %c4_33 = arith.constant 4 : index
    %102 = memref.load %arg3[%c4_33] : memref<32xf32, #tpu.memory_space<smem>>
    %103 = vector.broadcast %102 : f32 to vector<16x128xf32>
    %104 = arith.mulf %103, %1 : vector<16x128xf32>
    %c4_34 = arith.constant 4 : index
    %105 = memref.load %arg4[%c4_34] : memref<32xf32, #tpu.memory_space<smem>>
    %106 = vector.broadcast %105 : f32 to vector<16x128xf32>
    %107 = arith.addf %104, %106 : vector<16x128xf32>
    %108 = math.tanh %107 : vector<16x128xf32>
    %109 = vector.broadcast %101 : f32 to vector<16x128xf32>
    %110 = arith.mulf %109, %108 : vector<16x128xf32>
    %111 = arith.addf %100, %110 : vector<16x128xf32>
    %c5 = arith.constant 5 : index
    %112 = memref.load %arg5[%c5] : memref<32xf32, #tpu.memory_space<smem>>
    %c5_35 = arith.constant 5 : index
    %113 = memref.load %arg3[%c5_35] : memref<32xf32, #tpu.memory_space<smem>>
    %114 = vector.broadcast %113 : f32 to vector<16x128xf32>
    %115 = arith.mulf %114, %1 : vector<16x128xf32>
    %c5_36 = arith.constant 5 : index
    %116 = memref.load %arg4[%c5_36] : memref<32xf32, #tpu.memory_space<smem>>
    %117 = vector.broadcast %116 : f32 to vector<16x128xf32>
    %118 = arith.addf %115, %117 : vector<16x128xf32>
    %119 = math.tanh %118 : vector<16x128xf32>
    %120 = vector.broadcast %112 : f32 to vector<16x128xf32>
    %121 = arith.mulf %120, %119 : vector<16x128xf32>
    %122 = arith.addf %111, %121 : vector<16x128xf32>
    %c6 = arith.constant 6 : index
    %123 = memref.load %arg5[%c6] : memref<32xf32, #tpu.memory_space<smem>>
    %c6_37 = arith.constant 6 : index
    %124 = memref.load %arg3[%c6_37] : memref<32xf32, #tpu.memory_space<smem>>
    %125 = vector.broadcast %124 : f32 to vector<16x128xf32>
    %126 = arith.mulf %125, %1 : vector<16x128xf32>
    %c6_38 = arith.constant 6 : index
    %127 = memref.load %arg4[%c6_38] : memref<32xf32, #tpu.memory_space<smem>>
    %128 = vector.broadcast %127 : f32 to vector<16x128xf32>
    %129 = arith.addf %126, %128 : vector<16x128xf32>
    %130 = math.tanh %129 : vector<16x128xf32>
    %131 = vector.broadcast %123 : f32 to vector<16x128xf32>
    %132 = arith.mulf %131, %130 : vector<16x128xf32>
    %133 = arith.addf %122, %132 : vector<16x128xf32>
    %c7 = arith.constant 7 : index
    %134 = memref.load %arg5[%c7] : memref<32xf32, #tpu.memory_space<smem>>
    %c7_39 = arith.constant 7 : index
    %135 = memref.load %arg3[%c7_39] : memref<32xf32, #tpu.memory_space<smem>>
    %136 = vector.broadcast %135 : f32 to vector<16x128xf32>
    %137 = arith.mulf %136, %1 : vector<16x128xf32>
    %c7_40 = arith.constant 7 : index
    %138 = memref.load %arg4[%c7_40] : memref<32xf32, #tpu.memory_space<smem>>
    %139 = vector.broadcast %138 : f32 to vector<16x128xf32>
    %140 = arith.addf %137, %139 : vector<16x128xf32>
    %141 = math.tanh %140 : vector<16x128xf32>
    %142 = vector.broadcast %134 : f32 to vector<16x128xf32>
    %143 = arith.mulf %142, %141 : vector<16x128xf32>
    %144 = arith.addf %133, %143 : vector<16x128xf32>
    %c8 = arith.constant 8 : index
    %145 = memref.load %arg5[%c8] : memref<32xf32, #tpu.memory_space<smem>>
    %c8_41 = arith.constant 8 : index
    %146 = memref.load %arg3[%c8_41] : memref<32xf32, #tpu.memory_space<smem>>
    %147 = vector.broadcast %146 : f32 to vector<16x128xf32>
    %148 = arith.mulf %147, %1 : vector<16x128xf32>
    %c8_42 = arith.constant 8 : index
    %149 = memref.load %arg4[%c8_42] : memref<32xf32, #tpu.memory_space<smem>>
    %150 = vector.broadcast %149 : f32 to vector<16x128xf32>
    %151 = arith.addf %148, %150 : vector<16x128xf32>
    %152 = math.tanh %151 : vector<16x128xf32>
    %153 = vector.broadcast %145 : f32 to vector<16x128xf32>
    %154 = arith.mulf %153, %152 : vector<16x128xf32>
    %155 = arith.addf %144, %154 : vector<16x128xf32>
    %c9 = arith.constant 9 : index
    %156 = memref.load %arg5[%c9] : memref<32xf32, #tpu.memory_space<smem>>
    %c9_43 = arith.constant 9 : index
    %157 = memref.load %arg3[%c9_43] : memref<32xf32, #tpu.memory_space<smem>>
    %158 = vector.broadcast %157 : f32 to vector<16x128xf32>
    %159 = arith.mulf %158, %1 : vector<16x128xf32>
    %c9_44 = arith.constant 9 : index
    %160 = memref.load %arg4[%c9_44] : memref<32xf32, #tpu.memory_space<smem>>
    %161 = vector.broadcast %160 : f32 to vector<16x128xf32>
    %162 = arith.addf %159, %161 : vector<16x128xf32>
    %163 = math.tanh %162 : vector<16x128xf32>
    %164 = vector.broadcast %156 : f32 to vector<16x128xf32>
    %165 = arith.mulf %164, %163 : vector<16x128xf32>
    %166 = arith.addf %155, %165 : vector<16x128xf32>
    %c10 = arith.constant 10 : index
    %167 = memref.load %arg5[%c10] : memref<32xf32, #tpu.memory_space<smem>>
    %c10_45 = arith.constant 10 : index
    %168 = memref.load %arg3[%c10_45] : memref<32xf32, #tpu.memory_space<smem>>
    %169 = vector.broadcast %168 : f32 to vector<16x128xf32>
    %170 = arith.mulf %169, %1 : vector<16x128xf32>
    %c10_46 = arith.constant 10 : index
    %171 = memref.load %arg4[%c10_46] : memref<32xf32, #tpu.memory_space<smem>>
    %172 = vector.broadcast %171 : f32 to vector<16x128xf32>
    %173 = arith.addf %170, %172 : vector<16x128xf32>
    %174 = math.tanh %173 : vector<16x128xf32>
    %175 = vector.broadcast %167 : f32 to vector<16x128xf32>
    %176 = arith.mulf %175, %174 : vector<16x128xf32>
    %177 = arith.addf %166, %176 : vector<16x128xf32>
    %c11 = arith.constant 11 : index
    %178 = memref.load %arg5[%c11] : memref<32xf32, #tpu.memory_space<smem>>
    %c11_47 = arith.constant 11 : index
    %179 = memref.load %arg3[%c11_47] : memref<32xf32, #tpu.memory_space<smem>>
    %180 = vector.broadcast %179 : f32 to vector<16x128xf32>
    %181 = arith.mulf %180, %1 : vector<16x128xf32>
    %c11_48 = arith.constant 11 : index
    %182 = memref.load %arg4[%c11_48] : memref<32xf32, #tpu.memory_space<smem>>
    %183 = vector.broadcast %182 : f32 to vector<16x128xf32>
    %184 = arith.addf %181, %183 : vector<16x128xf32>
    %185 = math.tanh %184 : vector<16x128xf32>
    %186 = vector.broadcast %178 : f32 to vector<16x128xf32>
    %187 = arith.mulf %186, %185 : vector<16x128xf32>
    %188 = arith.addf %177, %187 : vector<16x128xf32>
    %c12 = arith.constant 12 : index
    %189 = memref.load %arg5[%c12] : memref<32xf32, #tpu.memory_space<smem>>
    %c12_49 = arith.constant 12 : index
    %190 = memref.load %arg3[%c12_49] : memref<32xf32, #tpu.memory_space<smem>>
    %191 = vector.broadcast %190 : f32 to vector<16x128xf32>
    %192 = arith.mulf %191, %1 : vector<16x128xf32>
    %c12_50 = arith.constant 12 : index
    %193 = memref.load %arg4[%c12_50] : memref<32xf32, #tpu.memory_space<smem>>
    %194 = vector.broadcast %193 : f32 to vector<16x128xf32>
    %195 = arith.addf %192, %194 : vector<16x128xf32>
    %196 = math.tanh %195 : vector<16x128xf32>
    %197 = vector.broadcast %189 : f32 to vector<16x128xf32>
    %198 = arith.mulf %197, %196 : vector<16x128xf32>
    %199 = arith.addf %188, %198 : vector<16x128xf32>
    %c13 = arith.constant 13 : index
    %200 = memref.load %arg5[%c13] : memref<32xf32, #tpu.memory_space<smem>>
    %c13_51 = arith.constant 13 : index
    %201 = memref.load %arg3[%c13_51] : memref<32xf32, #tpu.memory_space<smem>>
    %202 = vector.broadcast %201 : f32 to vector<16x128xf32>
    %203 = arith.mulf %202, %1 : vector<16x128xf32>
    %c13_52 = arith.constant 13 : index
    %204 = memref.load %arg4[%c13_52] : memref<32xf32, #tpu.memory_space<smem>>
    %205 = vector.broadcast %204 : f32 to vector<16x128xf32>
    %206 = arith.addf %203, %205 : vector<16x128xf32>
    %207 = math.tanh %206 : vector<16x128xf32>
    %208 = vector.broadcast %200 : f32 to vector<16x128xf32>
    %209 = arith.mulf %208, %207 : vector<16x128xf32>
    %210 = arith.addf %199, %209 : vector<16x128xf32>
    %c14 = arith.constant 14 : index
    %211 = memref.load %arg5[%c14] : memref<32xf32, #tpu.memory_space<smem>>
    %c14_53 = arith.constant 14 : index
    %212 = memref.load %arg3[%c14_53] : memref<32xf32, #tpu.memory_space<smem>>
    %213 = vector.broadcast %212 : f32 to vector<16x128xf32>
    %214 = arith.mulf %213, %1 : vector<16x128xf32>
    %c14_54 = arith.constant 14 : index
    %215 = memref.load %arg4[%c14_54] : memref<32xf32, #tpu.memory_space<smem>>
    %216 = vector.broadcast %215 : f32 to vector<16x128xf32>
    %217 = arith.addf %214, %216 : vector<16x128xf32>
    %218 = math.tanh %217 : vector<16x128xf32>
    %219 = vector.broadcast %211 : f32 to vector<16x128xf32>
    %220 = arith.mulf %219, %218 : vector<16x128xf32>
    %221 = arith.addf %210, %220 : vector<16x128xf32>
    %c15 = arith.constant 15 : index
    %222 = memref.load %arg5[%c15] : memref<32xf32, #tpu.memory_space<smem>>
    %c15_55 = arith.constant 15 : index
    %223 = memref.load %arg3[%c15_55] : memref<32xf32, #tpu.memory_space<smem>>
    %224 = vector.broadcast %223 : f32 to vector<16x128xf32>
    %225 = arith.mulf %224, %1 : vector<16x128xf32>
    %c15_56 = arith.constant 15 : index
    %226 = memref.load %arg4[%c15_56] : memref<32xf32, #tpu.memory_space<smem>>
    %227 = vector.broadcast %226 : f32 to vector<16x128xf32>
    %228 = arith.addf %225, %227 : vector<16x128xf32>
    %229 = math.tanh %228 : vector<16x128xf32>
    %230 = vector.broadcast %222 : f32 to vector<16x128xf32>
    %231 = arith.mulf %230, %229 : vector<16x128xf32>
    %232 = arith.addf %221, %231 : vector<16x128xf32>
    %c16 = arith.constant 16 : index
    %233 = memref.load %arg5[%c16] : memref<32xf32, #tpu.memory_space<smem>>
    %c16_57 = arith.constant 16 : index
    %234 = memref.load %arg3[%c16_57] : memref<32xf32, #tpu.memory_space<smem>>
    %235 = vector.broadcast %234 : f32 to vector<16x128xf32>
    %236 = arith.mulf %235, %1 : vector<16x128xf32>
    %c16_58 = arith.constant 16 : index
    %237 = memref.load %arg4[%c16_58] : memref<32xf32, #tpu.memory_space<smem>>
    %238 = vector.broadcast %237 : f32 to vector<16x128xf32>
    %239 = arith.addf %236, %238 : vector<16x128xf32>
    %240 = math.tanh %239 : vector<16x128xf32>
    %241 = vector.broadcast %233 : f32 to vector<16x128xf32>
    %242 = arith.mulf %241, %240 : vector<16x128xf32>
    %243 = arith.addf %232, %242 : vector<16x128xf32>
    %c17 = arith.constant 17 : index
    %244 = memref.load %arg5[%c17] : memref<32xf32, #tpu.memory_space<smem>>
    %c17_59 = arith.constant 17 : index
    %245 = memref.load %arg3[%c17_59] : memref<32xf32, #tpu.memory_space<smem>>
    %246 = vector.broadcast %245 : f32 to vector<16x128xf32>
    %247 = arith.mulf %246, %1 : vector<16x128xf32>
    %c17_60 = arith.constant 17 : index
    %248 = memref.load %arg4[%c17_60] : memref<32xf32, #tpu.memory_space<smem>>
    %249 = vector.broadcast %248 : f32 to vector<16x128xf32>
    %250 = arith.addf %247, %249 : vector<16x128xf32>
    %251 = math.tanh %250 : vector<16x128xf32>
    %252 = vector.broadcast %244 : f32 to vector<16x128xf32>
    %253 = arith.mulf %252, %251 : vector<16x128xf32>
    %254 = arith.addf %243, %253 : vector<16x128xf32>
    %c18 = arith.constant 18 : index
    %255 = memref.load %arg5[%c18] : memref<32xf32, #tpu.memory_space<smem>>
    %c18_61 = arith.constant 18 : index
    %256 = memref.load %arg3[%c18_61] : memref<32xf32, #tpu.memory_space<smem>>
    %257 = vector.broadcast %256 : f32 to vector<16x128xf32>
    %258 = arith.mulf %257, %1 : vector<16x128xf32>
    %c18_62 = arith.constant 18 : index
    %259 = memref.load %arg4[%c18_62] : memref<32xf32, #tpu.memory_space<smem>>
    %260 = vector.broadcast %259 : f32 to vector<16x128xf32>
    %261 = arith.addf %258, %260 : vector<16x128xf32>
    %262 = math.tanh %261 : vector<16x128xf32>
    %263 = vector.broadcast %255 : f32 to vector<16x128xf32>
    %264 = arith.mulf %263, %262 : vector<16x128xf32>
    %265 = arith.addf %254, %264 : vector<16x128xf32>
    %c19 = arith.constant 19 : index
    %266 = memref.load %arg5[%c19] : memref<32xf32, #tpu.memory_space<smem>>
    %c19_63 = arith.constant 19 : index
    %267 = memref.load %arg3[%c19_63] : memref<32xf32, #tpu.memory_space<smem>>
    %268 = vector.broadcast %267 : f32 to vector<16x128xf32>
    %269 = arith.mulf %268, %1 : vector<16x128xf32>
    %c19_64 = arith.constant 19 : index
    %270 = memref.load %arg4[%c19_64] : memref<32xf32, #tpu.memory_space<smem>>
    %271 = vector.broadcast %270 : f32 to vector<16x128xf32>
    %272 = arith.addf %269, %271 : vector<16x128xf32>
    %273 = math.tanh %272 : vector<16x128xf32>
    %274 = vector.broadcast %266 : f32 to vector<16x128xf32>
    %275 = arith.mulf %274, %273 : vector<16x128xf32>
    %276 = arith.addf %265, %275 : vector<16x128xf32>
    %c20 = arith.constant 20 : index
    %277 = memref.load %arg5[%c20] : memref<32xf32, #tpu.memory_space<smem>>
    %c20_65 = arith.constant 20 : index
    %278 = memref.load %arg3[%c20_65] : memref<32xf32, #tpu.memory_space<smem>>
    %279 = vector.broadcast %278 : f32 to vector<16x128xf32>
    %280 = arith.mulf %279, %1 : vector<16x128xf32>
    %c20_66 = arith.constant 20 : index
    %281 = memref.load %arg4[%c20_66] : memref<32xf32, #tpu.memory_space<smem>>
    %282 = vector.broadcast %281 : f32 to vector<16x128xf32>
    %283 = arith.addf %280, %282 : vector<16x128xf32>
    %284 = math.tanh %283 : vector<16x128xf32>
    %285 = vector.broadcast %277 : f32 to vector<16x128xf32>
    %286 = arith.mulf %285, %284 : vector<16x128xf32>
    %287 = arith.addf %276, %286 : vector<16x128xf32>
    %c21 = arith.constant 21 : index
    %288 = memref.load %arg5[%c21] : memref<32xf32, #tpu.memory_space<smem>>
    %c21_67 = arith.constant 21 : index
    %289 = memref.load %arg3[%c21_67] : memref<32xf32, #tpu.memory_space<smem>>
    %290 = vector.broadcast %289 : f32 to vector<16x128xf32>
    %291 = arith.mulf %290, %1 : vector<16x128xf32>
    %c21_68 = arith.constant 21 : index
    %292 = memref.load %arg4[%c21_68] : memref<32xf32, #tpu.memory_space<smem>>
    %293 = vector.broadcast %292 : f32 to vector<16x128xf32>
    %294 = arith.addf %291, %293 : vector<16x128xf32>
    %295 = math.tanh %294 : vector<16x128xf32>
    %296 = vector.broadcast %288 : f32 to vector<16x128xf32>
    %297 = arith.mulf %296, %295 : vector<16x128xf32>
    %298 = arith.addf %287, %297 : vector<16x128xf32>
    %c22 = arith.constant 22 : index
    %299 = memref.load %arg5[%c22] : memref<32xf32, #tpu.memory_space<smem>>
    %c22_69 = arith.constant 22 : index
    %300 = memref.load %arg3[%c22_69] : memref<32xf32, #tpu.memory_space<smem>>
    %301 = vector.broadcast %300 : f32 to vector<16x128xf32>
    %302 = arith.mulf %301, %1 : vector<16x128xf32>
    %c22_70 = arith.constant 22 : index
    %303 = memref.load %arg4[%c22_70] : memref<32xf32, #tpu.memory_space<smem>>
    %304 = vector.broadcast %303 : f32 to vector<16x128xf32>
    %305 = arith.addf %302, %304 : vector<16x128xf32>
    %306 = math.tanh %305 : vector<16x128xf32>
    %307 = vector.broadcast %299 : f32 to vector<16x128xf32>
    %308 = arith.mulf %307, %306 : vector<16x128xf32>
    %309 = arith.addf %298, %308 : vector<16x128xf32>
    %c23 = arith.constant 23 : index
    %310 = memref.load %arg5[%c23] : memref<32xf32, #tpu.memory_space<smem>>
    %c23_71 = arith.constant 23 : index
    %311 = memref.load %arg3[%c23_71] : memref<32xf32, #tpu.memory_space<smem>>
    %312 = vector.broadcast %311 : f32 to vector<16x128xf32>
    %313 = arith.mulf %312, %1 : vector<16x128xf32>
    %c23_72 = arith.constant 23 : index
    %314 = memref.load %arg4[%c23_72] : memref<32xf32, #tpu.memory_space<smem>>
    %315 = vector.broadcast %314 : f32 to vector<16x128xf32>
    %316 = arith.addf %313, %315 : vector<16x128xf32>
    %317 = math.tanh %316 : vector<16x128xf32>
    %318 = vector.broadcast %310 : f32 to vector<16x128xf32>
    %319 = arith.mulf %318, %317 : vector<16x128xf32>
    %320 = arith.addf %309, %319 : vector<16x128xf32>
    %c24 = arith.constant 24 : index
    %321 = memref.load %arg5[%c24] : memref<32xf32, #tpu.memory_space<smem>>
    %c24_73 = arith.constant 24 : index
    %322 = memref.load %arg3[%c24_73] : memref<32xf32, #tpu.memory_space<smem>>
    %323 = vector.broadcast %322 : f32 to vector<16x128xf32>
    %324 = arith.mulf %323, %1 : vector<16x128xf32>
    %c24_74 = arith.constant 24 : index
    %325 = memref.load %arg4[%c24_74] : memref<32xf32, #tpu.memory_space<smem>>
    %326 = vector.broadcast %325 : f32 to vector<16x128xf32>
    %327 = arith.addf %324, %326 : vector<16x128xf32>
    %328 = math.tanh %327 : vector<16x128xf32>
    %329 = vector.broadcast %321 : f32 to vector<16x128xf32>
    %330 = arith.mulf %329, %328 : vector<16x128xf32>
    %331 = arith.addf %320, %330 : vector<16x128xf32>
    %c25 = arith.constant 25 : index
    %332 = memref.load %arg5[%c25] : memref<32xf32, #tpu.memory_space<smem>>
    %c25_75 = arith.constant 25 : index
    %333 = memref.load %arg3[%c25_75] : memref<32xf32, #tpu.memory_space<smem>>
    %334 = vector.broadcast %333 : f32 to vector<16x128xf32>
    %335 = arith.mulf %334, %1 : vector<16x128xf32>
    %c25_76 = arith.constant 25 : index
    %336 = memref.load %arg4[%c25_76] : memref<32xf32, #tpu.memory_space<smem>>
    %337 = vector.broadcast %336 : f32 to vector<16x128xf32>
    %338 = arith.addf %335, %337 : vector<16x128xf32>
    %339 = math.tanh %338 : vector<16x128xf32>
    %340 = vector.broadcast %332 : f32 to vector<16x128xf32>
    %341 = arith.mulf %340, %339 : vector<16x128xf32>
    %342 = arith.addf %331, %341 : vector<16x128xf32>
    %c26 = arith.constant 26 : index
    %343 = memref.load %arg5[%c26] : memref<32xf32, #tpu.memory_space<smem>>
    %c26_77 = arith.constant 26 : index
    %344 = memref.load %arg3[%c26_77] : memref<32xf32, #tpu.memory_space<smem>>
    %345 = vector.broadcast %344 : f32 to vector<16x128xf32>
    %346 = arith.mulf %345, %1 : vector<16x128xf32>
    %c26_78 = arith.constant 26 : index
    %347 = memref.load %arg4[%c26_78] : memref<32xf32, #tpu.memory_space<smem>>
    %348 = vector.broadcast %347 : f32 to vector<16x128xf32>
    %349 = arith.addf %346, %348 : vector<16x128xf32>
    %350 = math.tanh %349 : vector<16x128xf32>
    %351 = vector.broadcast %343 : f32 to vector<16x128xf32>
    %352 = arith.mulf %351, %350 : vector<16x128xf32>
    %353 = arith.addf %342, %352 : vector<16x128xf32>
    %c27 = arith.constant 27 : index
    %354 = memref.load %arg5[%c27] : memref<32xf32, #tpu.memory_space<smem>>
    %c27_79 = arith.constant 27 : index
    %355 = memref.load %arg3[%c27_79] : memref<32xf32, #tpu.memory_space<smem>>
    %356 = vector.broadcast %355 : f32 to vector<16x128xf32>
    %357 = arith.mulf %356, %1 : vector<16x128xf32>
    %c27_80 = arith.constant 27 : index
    %358 = memref.load %arg4[%c27_80] : memref<32xf32, #tpu.memory_space<smem>>
    %359 = vector.broadcast %358 : f32 to vector<16x128xf32>
    %360 = arith.addf %357, %359 : vector<16x128xf32>
    %361 = math.tanh %360 : vector<16x128xf32>
    %362 = vector.broadcast %354 : f32 to vector<16x128xf32>
    %363 = arith.mulf %362, %361 : vector<16x128xf32>
    %364 = arith.addf %353, %363 : vector<16x128xf32>
    %c28 = arith.constant 28 : index
    %365 = memref.load %arg5[%c28] : memref<32xf32, #tpu.memory_space<smem>>
    %c28_81 = arith.constant 28 : index
    %366 = memref.load %arg3[%c28_81] : memref<32xf32, #tpu.memory_space<smem>>
    %367 = vector.broadcast %366 : f32 to vector<16x128xf32>
    %368 = arith.mulf %367, %1 : vector<16x128xf32>
    %c28_82 = arith.constant 28 : index
    %369 = memref.load %arg4[%c28_82] : memref<32xf32, #tpu.memory_space<smem>>
    %370 = vector.broadcast %369 : f32 to vector<16x128xf32>
    %371 = arith.addf %368, %370 : vector<16x128xf32>
    %372 = math.tanh %371 : vector<16x128xf32>
    %373 = vector.broadcast %365 : f32 to vector<16x128xf32>
    %374 = arith.mulf %373, %372 : vector<16x128xf32>
    %375 = arith.addf %364, %374 : vector<16x128xf32>
    %c29 = arith.constant 29 : index
    %376 = memref.load %arg5[%c29] : memref<32xf32, #tpu.memory_space<smem>>
    %c29_83 = arith.constant 29 : index
    %377 = memref.load %arg3[%c29_83] : memref<32xf32, #tpu.memory_space<smem>>
    %378 = vector.broadcast %377 : f32 to vector<16x128xf32>
    %379 = arith.mulf %378, %1 : vector<16x128xf32>
    %c29_84 = arith.constant 29 : index
    %380 = memref.load %arg4[%c29_84] : memref<32xf32, #tpu.memory_space<smem>>
    %381 = vector.broadcast %380 : f32 to vector<16x128xf32>
    %382 = arith.addf %379, %381 : vector<16x128xf32>
    %383 = math.tanh %382 : vector<16x128xf32>
    %384 = vector.broadcast %376 : f32 to vector<16x128xf32>
    %385 = arith.mulf %384, %383 : vector<16x128xf32>
    %386 = arith.addf %375, %385 : vector<16x128xf32>
    %c30 = arith.constant 30 : index
    %387 = memref.load %arg5[%c30] : memref<32xf32, #tpu.memory_space<smem>>
    %c30_85 = arith.constant 30 : index
    %388 = memref.load %arg3[%c30_85] : memref<32xf32, #tpu.memory_space<smem>>
    %389 = vector.broadcast %388 : f32 to vector<16x128xf32>
    %390 = arith.mulf %389, %1 : vector<16x128xf32>
    %c30_86 = arith.constant 30 : index
    %391 = memref.load %arg4[%c30_86] : memref<32xf32, #tpu.memory_space<smem>>
    %392 = vector.broadcast %391 : f32 to vector<16x128xf32>
    %393 = arith.addf %390, %392 : vector<16x128xf32>
    %394 = math.tanh %393 : vector<16x128xf32>
    %395 = vector.broadcast %387 : f32 to vector<16x128xf32>
    %396 = arith.mulf %395, %394 : vector<16x128xf32>
    %397 = arith.addf %386, %396 : vector<16x128xf32>
    %c31 = arith.constant 31 : index
    %398 = memref.load %arg5[%c31] : memref<32xf32, #tpu.memory_space<smem>>
    %c31_87 = arith.constant 31 : index
    %399 = memref.load %arg3[%c31_87] : memref<32xf32, #tpu.memory_space<smem>>
    %400 = vector.broadcast %399 : f32 to vector<16x128xf32>
    %401 = arith.mulf %400, %1 : vector<16x128xf32>
    %c31_88 = arith.constant 31 : index
    %402 = memref.load %arg4[%c31_88] : memref<32xf32, #tpu.memory_space<smem>>
    %403 = vector.broadcast %402 : f32 to vector<16x128xf32>
    %404 = arith.addf %401, %403 : vector<16x128xf32>
    %405 = math.tanh %404 : vector<16x128xf32>
    %406 = vector.broadcast %398 : f32 to vector<16x128xf32>
    %407 = arith.mulf %406, %405 : vector<16x128xf32>
    %408 = arith.addf %397, %407 : vector<16x128xf32>
    %cst_89 = arith.constant 5.000000e-01 : f32
    %409 = vector.broadcast %cst_89 : f32 to vector<16x128xf32>
    %410 = arith.mulf %409, %408 : vector<16x128xf32>
    %411 = math.tanh %410 : vector<16x128xf32>
    %cst_90 = arith.constant 1.000000e+00 : f32
    %412 = vector.broadcast %cst_90 : f32 to vector<16x128xf32>
    %413 = arith.addf %412, %411 : vector<16x128xf32>
    %cst_91 = arith.constant 5.000000e-01 : f32
    %414 = vector.broadcast %cst_91 : f32 to vector<16x128xf32>
    %415 = arith.mulf %414, %413 : vector<16x128xf32>
    %cst_92 = arith.constant 2.500000e-01 : f32
    %416 = vector.broadcast %cst_92 : f32 to vector<16x128xf32>
    %417 = arith.mulf %415, %416 : vector<16x128xf32>
    %c1_93 = arith.constant 1 : index
    %c0_94 = arith.constant 0 : index
    %c0_95 = arith.constant 0 : index
    %418 = vector.load %arg2[%c1_93, %c0_94, %c0_95] : memref<2x16x128xf32, #tpu.memory_space<vmem>>, vector<1x16x128xf32>
    %419 = vector.shape_cast %418 : vector<1x16x128xf32> to vector<16x128xf32>
    %420 = arith.subf %4, %1 : vector<16x128xf32>
    %421 = arith.mulf %420, %417 : vector<16x128xf32>
    %cst_96 = arith.constant 1.000000e+00 : f32
    %422 = vector.broadcast %cst_96 : f32 to vector<16x128xf32>
    %423 = arith.subf %422, %1 : vector<16x128xf32>
    %424 = arith.mulf %423, %417 : vector<16x128xf32>
    %425 = arith.select %11, %424, %421 : vector<16x128xi1>, vector<16x128xf32>
    %426 = arith.subf %5, %1 : vector<16x128xf32>
    %427 = arith.mulf %426, %417 : vector<16x128xf32>
    %428 = arith.subf %1, %419 : vector<16x128xf32>
    %cst_97 = arith.constant 0.0147058824 : f32
    %429 = vector.broadcast %cst_97 : f32 to vector<16x128xf32>
    %430 = arith.mulf %428, %429 : vector<16x128xf32>
    %431 = arith.select %3, %419, %430 : vector<16x128xf32>
    %432 = arith.subf %431, %1 : vector<16x128xf32>
    %433 = arith.mulf %432, %417 : vector<16x128xf32>
    %434 = arith.select %13, %433, %427 : vector<16x128xi1>, vector<16x128xf32>
    %435 = arith.addf %425, %434 : vector<16x128xf32>
    %436 = arith.subf %6, %1 : vector<16x128xf32>
    %437 = arith.mulf %436, %417 : vector<16x128xf32>
    %cst_98 = arith.constant 0.000000e+00 : f32
    %438 = vector.broadcast %cst_98 : f32 to vector<16x128xf32>
    %439 = arith.select %15, %438, %437 : vector<16x128xi1>, vector<16x128xf32>
    %440 = arith.addf %435, %439 : vector<16x128xf32>
    %441 = arith.subf %7, %1 : vector<16x128xf32>
    %442 = arith.mulf %441, %417 : vector<16x128xf32>
    %cst_99 = arith.constant 0.000000e+00 : f32
    %443 = vector.broadcast %cst_99 : f32 to vector<16x128xf32>
    %444 = arith.select %17, %443, %442 : vector<16x128xi1>, vector<16x128xf32>
    %445 = arith.addf %440, %444 : vector<16x128xf32>
    %c1_100 = arith.constant 1 : index
    %c0_101 = arith.constant 0 : index
    %c0_102 = arith.constant 0 : index
    %446 = vector.load %arg7[%c1_100, %c0_101, %c0_102] : memref<2x16x128xf32, #tpu.memory_space<vmem>>, vector<1x16x128xf32>
    %447 = vector.shape_cast %446 : vector<1x16x128xf32> to vector<16x128xf32>
    %448 = vector.shape_cast %445 : vector<16x128xf32> to vector<1x16x128xf32>
    tpu.vector_store %arg7[%c1_100, %c0_101, %c0_102], %448 {strides = array<i32>} : memref<2x16x128xf32, #tpu.memory_space<vmem>>, vector<1x16x128xf32>,
    return
  }
}

</mosaic_0001>

<llo_original>
// kernel: tpu_custom_call.1
$region0: #{tpu_custom_call.1}
  #allocation0 [shape = 'u32[]', space=smem, size = 0x4, offset = 0x4, fixed_abs, tag = 'smem constant byte address 0x4 - core index']
  #allocation1 [shape = 'u32[72,128]{1,0:T(1,128)}', space=vmem, size = 0x9000, scoped, tag = 'internal scratch']
  #allocation2 [shape = 'f32[1]{0:T(128)S(6)}', space=smem, size = 0x200, scoped, tag = 'scoped memory for tpu_custom_call.1']
  #allocation3 [shape = 'f32[1]{0:T(128)S(6)}', space=smem, size = 0x200, scoped, tag = 'scoped memory for tpu_custom_call.1']
  %s0 = inlined_call_operand.<no memory space> [shape: f32[1], index: 0, kind: input, shape index: {}]
  %s1 = inlined_call_operand.hbm [shape: f32[2,16,128], index: 1, kind: input, shape index: {}]
  %s2 = inlined_call_operand.hbm [shape: f32[2,16,128], index: 2, kind: input, shape index: {}]
  %s3 = inlined_call_operand.vmem [shape: f32[32], index: 3, kind: input, shape index: {}]
  %s4 = inlined_call_operand.vmem [shape: f32[32], index: 4, kind: input, shape index: {}]
  %s5 = inlined_call_operand.vmem [shape: f32[32], index: 5, kind: input, shape index: {}]
  %s6 = inlined_call_operand.<no memory space> [shape: f32[1], index: 6, kind: input, shape index: {}]
  %s7 = inlined_call_operand.hbm [shape: f32[2,16,128], index: 7, kind: output, shape index: {}]
  %s8 = sld [smem:[#allocation0]]
  $region58: #{tpu_custom_call.1} parent=0
    _
  %s10 = ssub.s32 1, %s8
  %s11 = scalar_select 0, %s10, %s8
  %12 = sst [smem:[#allocation2]] %s0
  %13 = sst [smem:[#allocation3]] %s6
  $region1: #{tpu_custom_call.1} parent=0
    #allocation4 [shape = 'u8[16384]{0}', space=vmem, size = 0x4000, scoped, tag = 'input window, operand 1, single buffered']
    #allocation5 [shape = 's32[1]{0}', space=sflag, size = 0x4, scoped, tag = 'scoped memory for tpu_custom_call.1']
    #allocation6 [shape = 's32[1]{0}', space=sflag, size = 0x4, scoped, tag = 'scoped memory for tpu_custom_call.1']
    #allocation7 [shape = 's32[1]{0}', space=sflag, size = 0x4, scoped, tag = 'scoped memory for tpu_custom_call.1']
    #allocation8 [shape = 'u8[16384]{0}', space=vmem, size = 0x4000, scoped, tag = 'input window, operand 2, single buffered']
    #allocation9 [shape = 's32[1]{0}', space=sflag, size = 0x4, scoped, tag = 'scoped memory for tpu_custom_call.1']
    #allocation10 [shape = 'u8[512]{0}', space=smem, size = 0x200, scoped, tag = 'input window, operand 3, single buffered']
    #allocation11 [shape = 'u8[512]{0}', space=smem, size = 0x200, scoped, tag = 'input window, operand 4, single buffered']
    #allocation12 [shape = 's32[1]{0}', space=sflag, size = 0x4, scoped, tag = 'scoped memory for tpu_custom_call.1']
    #allocation13 [shape = 'u8[512]{0}', space=smem, size = 0x200, scoped, tag = 'input window, operand 5, single buffered']
    #allocation14 [shape = 'u8[16384]{0}', space=vmem, size = 0x4000, scoped, tag = 'output window, operand 0, single buffered']
    %14 = vsyncpa [#allocation5], 0
    %15 = vsyncpa [#allocation9], 0
    %16 = vsyncpa [#allocation7], 0
    %17 = vsyncpa [#allocation12], 0
    %18 = vsyncpa [#allocation6], 0
    // Predicated region
    $region2: #{tpu_custom_call.1} parent=1 // pred_check
      _
    $region3: #{tpu_custom_call.1} parent=1 // pred_check_branch
      %20 = sbr.rel (0) target = $region5
    $region4: #{tpu_custom_call.1} parent=1 // pred_region
      _
    $region5: #{tpu_custom_call.1} parent=1 // pred_fallthru
      _
    // Predicated region
    $region6: #{tpu_custom_call.1} parent=1 // pred_check
      _
    $region7: #{tpu_custom_call.1} parent=1 // pred_check_branch
      %22 = sbr.rel (0) target = $region9
    $region8: #{tpu_custom_call.1} parent=1 // pred_region
      %24 = vsyncadd [#allocation5], 0
      %s25 = sshll.u32 %s1, 4
      %s26 = int_to_ptr.hbm [resolvable:$true] %s25
      %s27 = sshll.u32 [#allocation4], 4
      %s28 = int_to_ptr.vmem [resolvable:$true] %s27
      %33 = dma.hbm_to_vmem [thread:$0]  %s26, 512, %s28, [#allocation5], 128, 128, 8
    $region9: #{tpu_custom_call.1} parent=1 // pred_fallthru
      _
    // Predicated region
    $region10: #{tpu_custom_call.1} parent=1 // pred_check
      _
    $region11: #{tpu_custom_call.1} parent=1 // pred_check_branch
      %35 = sbr.rel (0) target = $region13
    $region12: #{tpu_custom_call.1} parent=1 // pred_region
      %37 = vsyncadd [#allocation9], 0
      %s38 = sshll.u32 %s2, 4
      %s39 = int_to_ptr.hbm [resolvable:$true] %s38
      %s40 = sshll.u32 [#allocation8], 4
      %s41 = int_to_ptr.vmem [resolvable:$true] %s40
      %46 = dma.hbm_to_vmem [thread:$0]  %s39, 512, %s41, [#allocation9], 128, 128, 8
    $region13: #{tpu_custom_call.1} parent=1 // pred_fallthru
      _
    // Predicated region
    $region14: #{tpu_custom_call.1} parent=1 // pred_check
      _
    $region15: #{tpu_custom_call.1} parent=1 // pred_check_branch
      %48 = sbr.rel (0) target = $region17
    $region16: #{tpu_custom_call.1} parent=1 // pred_region
      %50 = vsyncadd [#allocation7], 0
      %s52 = sshll.u32 %s3, 4
      %s53 = int_to_ptr.vmem [resolvable:$true] %s52
      %55 = dma.vmem_to_smem %s53, 16, [#allocation10], [#allocation7]
    $region17: #{tpu_custom_call.1} parent=1 // pred_fallthru
      _
    // Predicated region
    $region18: #{tpu_custom_call.1} parent=1 // pred_check
      _
    $region19: #{tpu_custom_call.1} parent=1 // pred_check_branch
      %57 = sbr.rel (0) target = $region21
    $region20: #{tpu_custom_call.1} parent=1 // pred_region
      %59 = vsyncadd [#allocation12], 0
      %s61 = sshll.u32 %s4, 4
      %s62 = int_to_ptr.vmem [resolvable:$true] %s61
      %64 = dma.vmem_to_smem %s62, 16, [#allocation11], [#allocation12]
    $region21: #{tpu_custom_call.1} parent=1 // pred_fallthru
      _
    // Predicated region
    $region22: #{tpu_custom_call.1} parent=1 // pred_check
      _
    $region23: #{tpu_custom_call.1} parent=1 // pred_check_branch
      %66 = sbr.rel (0) target = $region25
    $region24: #{tpu_custom_call.1} parent=1 // pred_region
      %68 = vsyncadd [#allocation12], 0
      %s70 = sshll.u32 %s5, 4
      %s71 = int_to_ptr.vmem [resolvable:$true] %s70
      %73 = dma.vmem_to_smem %s71, 16, [#allocation13], [#allocation12]
    $region25: #{tpu_custom_call.1} parent=1 // pred_fallthru
      _
    // Predicated region
    $region26: #{tpu_custom_call.1} parent=1 // pred_check
      _
    $region27: #{tpu_custom_call.1} parent=1 // pred_check_branch
      %75 = sbr.rel (0) target = $region29
    $region28: #{tpu_custom_call.1} parent=1 // pred_region
      _
    $region29: #{tpu_custom_call.1} parent=1 // pred_fallthru
      _
    // Predicated region
    $region30: #{tpu_custom_call.1} parent=1 // pred_check
      _
    $region31: #{tpu_custom_call.1} parent=1 // pred_check_branch
      %77 = sbr.rel (0) target = $region33
    $region32: #{tpu_custom_call.1} parent=1 // pred_region
      %79 = dma.done [#allocation5], 512
    $region33: #{tpu_custom_call.1} parent=1 // pred_fallthru
      _
    // Predicated region
    $region34: #{tpu_custom_call.1} parent=1 // pred_check
      _
    $region35: #{tpu_custom_call.1} parent=1 // pred_check_branch
      %81 = sbr.rel (0) target = $region37
    $region36: #{tpu_custom_call.1} parent=1 // pred_region
      %83 = dma.done [#allocation9], 512
    $region37: #{tpu_custom_call.1} parent=1 // pred_fallthru
      _
    // Predicated region
    $region38: #{tpu_custom_call.1} parent=1 // pred_check
      _
    $region39: #{tpu_custom_call.1} parent=1 // pred_check_branch
      %85 = sbr.rel (0) target = $region41
    $region40: #{tpu_custom_call.1} parent=1 // pred_region
      %87 = dma.done [#allocation7], 16
    $region41: #{tpu_custom_call.1} parent=1 // pred_fallthru
      _
    // Predicated region
    $region42: #{tpu_custom_call.1} parent=1 // pred_check
      _
    $region43: #{tpu_custom_call.1} parent=1 // pred_check_branch
      %89 = sbr.rel (0) target = $region45
    $region44: #{tpu_custom_call.1} parent=1 // pred_region
      %91 = dma.done [#allocation12], 16
    $region45: #{tpu_custom_call.1} parent=1 // pred_fallthru
      _
    // Predicated region
    $region46: #{tpu_custom_call.1} parent=1 // pred_check
      _
    $region47: #{tpu_custom_call.1} parent=1 // pred_check_branch
      %93 = sbr.rel (0) target = $region49
    $region48: #{tpu_custom_call.1} parent=1 // pred_region
      %95 = dma.done [#allocation12], 16
    $region49: #{tpu_custom_call.1} parent=1 // pred_fallthru
      _
    %96 = sfence
    %v97 = vld [vmem:[#allocation4] sm:$0xff]
    %v98 = vld [vmem:[#allocation4 + $0x8] sm:$0xff]
    %s99 = sld [smem:[#allocation2]]
    %p100 = scmp.eq.f32.partialorder %s99, 0.0
    %v101 = vrot.slane %v97, 7
    %v102 = vrot.slane %v98, 7
    %v103 = vlaneseq
    %v104 = vshrl.u32 %v103, 7
    %vm105 = vcmp.lt.s32.totalorder %v104, 1
    %v106 = vsel %vm105, %v101, %v102
    %v107 = vsel %vm105, %v102, %v101
    %v108 = vrot.slane %v97, 1
    %v109 = vrot.slane %v98, 1
    %vm110 = vcmp.lt.s32.totalorder %v104, 7
    %v111 = vsel %vm110, %v108, %v109
    %v112 = vsel %vm110, %v109, %v108
    %113 = vrot.lane.b32.xlu0 %v97, 1
    %v114 = vpop.permute.xlu0 %113
    %115 = vrot.lane.b32.xlu0 %v98, 1
    %v116 = vpop.permute.xlu0 %115
    %117 = vrot.lane.b32.xlu0 %v97, 127
    %v118 = vpop.permute.xlu0 %117
    %119 = vrot.lane.b32.xlu0 %v98, 127
    %v120 = vpop.permute.xlu0 %119
    %v121 = vadd.s32 %v104, 8
    %v122 = vlaneseq
    %v123 = vand.u32 %v122, 127
    %vm124 = vcmp.eq.s32.totalorder %v104, 0
    %vm125 = vcmp.eq.s32.totalorder %v121, 0
    %vm126 = vcmp.eq.s32.totalorder %v104, 15
    %vm127 = vcmp.eq.s32.totalorder %v121, 15
    %vm128 = vcmp.eq.s32.totalorder %v123, 0
    %vm129 = vcmp.eq.s32.totalorder %v123, 127
    %v130 = vld [vmem:[#allocation8] sm:$0xff]
    %v131 = vld [vmem:[#allocation8 + $0x8] sm:$0xff]
    %v132 = vsub.f32 %v107, %v97
    %v133 = vsub.f32 %v106, %v98
    %v134 = vmul.f32 %v132, 0.1445
    %v135 = vmul.f32 %v133, 0.1445
    %v136 = vsub.f32 1.0, %v97
    %v137 = vsub.f32 1.0, %v98
    %v138 = vmul.f32 %v136, 0.1445
    %v139 = vmul.f32 %v137, 0.1445
    %v140 = vsel %vm124, %v138, %v134
    %v141 = vsel %vm125, %v139, %v135
    %v142 = vsub.f32 %v111, %v97
    %v143 = vsub.f32 %v112, %v98
    %v144 = vmul.f32 %v142, 0.1445
    %v145 = vmul.f32 %v143, 0.1445
    %v146 = vsub.f32 %v97, %v130
    %v147 = vsub.f32 %v98, %v131
    %v148 = vmul.f32 %v146, 0.0085
    %v149 = vmul.f32 %v147, 0.0085
    %s150 = scalar_select %p100, 1, 0
    %v151 = vstv %s150
    %vm152 = vcmp.eq.s32.totalorder %v151, 1
    %v153 = vsel %vm152, %v130, %v148
    %v154 = vsel %vm152, %v131, %v149
    %v155 = vsub.f32 %v153, %v97
    %v156 = vsub.f32 %v154, %v98
    %v157 = vmul.f32 %v155, 0.1445
    %v158 = vmul.f32 %v156, 0.1445
    %v159 = vsel %vm126, %v157, %v144
    %v160 = vsel %vm127, %v158, %v145
    %v161 = vadd.f32 %v140, %v159
    %v162 = vadd.f32 %v141, %v160
    %v163 = vsub.f32 %v114, %v97
    %v164 = vsub.f32 %v116, %v98
    %v165 = vmul.f32 %v163, 0.1445
    %v166 = vmul.f32 %v164, 0.1445
    %v167 = vsel %vm128, 0.0, %v165
    %v168 = vsel %vm128, 0.0, %v166
    %v169 = vadd.f32 %v161, %v167
    %v170 = vadd.f32 %v162, %v168
    %v171 = vsub.f32 %v118, %v97
    %v172 = vsub.f32 %v120, %v98
    %v173 = vmul.f32 %v171, 0.1445
    %v174 = vmul.f32 %v172, 0.1445
    %v175 = vsel %vm129, 0.0, %v173
    %v176 = vsel %vm129, 0.0, %v174
    %v177 = vadd.f32 %v169, %v175
    %v178 = vadd.f32 %v170, %v176
    %179 = vst [vmem:[#allocation14] sm:$0xff] %v177
    %180 = vst [vmem:[#allocation14 + $0x8] sm:$0xff] %v178
    %s181 = sld [smem:[#allocation3]]
    %v182 = vstv %s181
    %s183 = sld [smem:[#allocation13]]
    %s184 = sld [smem:[#allocation10]]
    %v185 = vstv %s184
    %v186 = vmul.f32 %v185, %v97
    %v187 = vmul.f32 %v185, %v98
    %s188 = sld [smem:[#allocation11]]
    %v189 = vstv %s188
    %v190 = vadd.f32 %v186, %v189
    %v191 = vadd.f32 %v187, %v189
    %v192 = vtanh.pop %v190
    %v193 = vtanh.pop %v191
    %v194 = vstv %s183
    %v195 = vmul.f32 %v194, %v192
    %v196 = vmul.f32 %v194, %v193
    %v197 = vadd.f32 %v182, %v195
    %v198 = vadd.f32 %v182, %v196
    %s199 = sld [smem:[#allocation13 + $0x1]]
    %s200 = sld [smem:[#allocation10 + $0x1]]
    %v201 = vstv %s200
    %v202 = vmul.f32 %v201, %v97
    %v203 = vmul.f32 %v201, %v98
    %s204 = sld [smem:[#allocation11 + $0x1]]
    %v205 = vstv %s204
    %v206 = vadd.f32 %v202, %v205
    %v207 = vadd.f32 %v203, %v205
    %v208 = vtanh.pop %v206
    %v209 = vtanh.pop %v207
    %v210 = vstv %s199
    %v211 = vmul.f32 %v210, %v208
    %v212 = vmul.f32 %v210, %v209
    %v213 = vadd.f32 %v197, %v211
    %v214 = vadd.f32 %v198, %v212
    %s215 = sld [smem:[#allocation13 + $0x2]]
    %s216 = sld [smem:[#allocation10 + $0x2]]
    %v217 = vstv %s216
    %v218 = vmul.f32 %v217, %v97
    %v219 = vmul.f32 %v217, %v98
    %s220 = sld [smem:[#allocation11 + $0x2]]
    %v221 = vstv %s220
    %v222 = vadd.f32 %v218, %v221
    %v223 = vadd.f32 %v219, %v221
    %v224 = vtanh.pop %v222
    %v225 = vtanh.pop %v223
    %v226 = vstv %s215
    %v227 = vmul.f32 %v226, %v224
    %v228 = vmul.f32 %v226, %v225
    %v229 = vadd.f32 %v213, %v227
    %v230 = vadd.f32 %v214, %v228
    %s231 = sld [smem:[#allocation13 + $0x3]]
    %s232 = sld [smem:[#allocation10 + $0x3]]
    %v233 = vstv %s232
    %v234 = vmul.f32 %v233, %v97
    %v235 = vmul.f32 %v233, %v98
    %s236 = sld [smem:[#allocation11 + $0x3]]
    %v237 = vstv %s236
    %v238 = vadd.f32 %v234, %v237
    %v239 = vadd.f32 %v235, %v237
    %v240 = vtanh.pop %v238
    %v241 = vtanh.pop %v239
    %v242 = vstv %s231
    %v243 = vmul.f32 %v242, %v240
    %v244 = vmul.f32 %v242, %v241
    %v245 = vadd.f32 %v229, %v243
    %v246 = vadd.f32 %v230, %v244
    %s247 = sld [smem:[#allocation13 + $0x4]]
    %s248 = sld [smem:[#allocation10 + $0x4]]
    %v249 = vstv %s248
    %v250 = vmul.f32 %v249, %v97
    %v251 = vmul.f32 %v249, %v98
    %s252 = sld [smem:[#allocation11 + $0x4]]
    %v253 = vstv %s252
    %v254 = vadd.f32 %v250, %v253
    %v255 = vadd.f32 %v251, %v253
    %v256 = vtanh.pop %v254
    %v257 = vtanh.pop %v255
    %v258 = vstv %s247
    %v259 = vmul.f32 %v258, %v256
    %v260 = vmul.f32 %v258, %v257
    %v261 = vadd.f32 %v245, %v259
    %v262 = vadd.f32 %v246, %v260
    %s263 = sld [smem:[#allocation13 + $0x5]]
    %s264 = sld [smem:[#allocation10 + $0x5]]
    %v265 = vstv %s264
    %v266 = vmul.f32 %v265, %v97
    %v267 = vmul.f32 %v265, %v98
    %s268 = sld [smem:[#allocation11 + $0x5]]
    %v269 = vstv %s268
    %v270 = vadd.f32 %v266, %v269
    %v271 = vadd.f32 %v267, %v269
    %v272 = vtanh.pop %v270
    %v273 = vtanh.pop %v271
    %v274 = vstv %s263
    %v275 = vmul.f32 %v274, %v272
    %v276 = vmul.f32 %v274, %v273
    %v277 = vadd.f32 %v261, %v275
    %v278 = vadd.f32 %v262, %v276
    %s279 = sld [smem:[#allocation13 + $0x6]]
    %s280 = sld [smem:[#allocation10 + $0x6]]
    %v281 = vstv %s280
    %v282 = vmul.f32 %v281, %v97
    %v283 = vmul.f32 %v281, %v98
    %s284 = sld [smem:[#allocation11 + $0x6]]
    %v285 = vstv %s284
    %v286 = vadd.f32 %v282, %v285
    %v287 = vadd.f32 %v283, %v285
    %v288 = vtanh.pop %v286
    %v289 = vtanh.pop %v287
    %v290 = vstv %s279
    %v291 = vmul.f32 %v290, %v288
    %v292 = vmul.f32 %v290, %v289
    %v293 = vadd.f32 %v277, %v291
    %v294 = vadd.f32 %v278, %v292
    %s295 = sld [smem:[#allocation13 + $0x7]]
    %s296 = sld [smem:[#allocation10 + $0x7]]
    %v297 = vstv %s296
    %v298 = vmul.f32 %v297, %v97
    %v299 = vmul.f32 %v297, %v98
    %s300 = sld [smem:[#allocation11 + $0x7]]
    %v301 = vstv %s300
    %v302 = vadd.f32 %v298, %v301
    %v303 = vadd.f32 %v299, %v301
    %v304 = vtanh.pop %v302
    %v305 = vtanh.pop %v303
    %v306 = vstv %s295
    %v307 = vmul.f32 %v306, %v304
    %v308 = vmul.f32 %v306, %v305
    %v309 = vadd.f32 %v293, %v307
    %v310 = vadd.f32 %v294, %v308
    %s311 = sld [smem:[#allocation13 + $0x8]]
    %s312 = sld [smem:[#allocation10 + $0x8]]
    %v313 = vstv %s312
    %v314 = vmul.f32 %v313, %v97
    %v315 = vmul.f32 %v313, %v98
    %s316 = sld [smem:[#allocation11 + $0x8]]
    %v317 = vstv %s316
    %v318 = vadd.f32 %v314, %v317
    %v319 = vadd.f32 %v315, %v317
    %v320 = vtanh.pop %v318
    %v321 = vtanh.pop %v319
    %v322 = vstv %s311
    %v323 = vmul.f32 %v322, %v320
    %v324 = vmul.f32 %v322, %v321
    %v325 = vadd.f32 %v309, %v323
    %v326 = vadd.f32 %v310, %v324
    %s327 = sld [smem:[#allocation13 + $0x9]]
    %s328 = sld [smem:[#allocation10 + $0x9]]
    %v329 = vstv %s328
    %v330 = vmul.f32 %v329, %v97
    %v331 = vmul.f32 %v329, %v98
    %s332 = sld [smem:[#allocation11 + $0x9]]
    %v333 = vstv %s332
    %v334 = vadd.f32 %v330, %v333
    %v335 = vadd.f32 %v331, %v333
    %v336 = vtanh.pop %v334
    %v337 = vtanh.pop %v335
    %v338 = vstv %s327
    %v339 = vmul.f32 %v338, %v336
    %v340 = vmul.f32 %v338, %v337
    %v341 = vadd.f32 %v325, %v339
    %v342 = vadd.f32 %v326, %v340
    %s343 = sld [smem:[#allocation13 + $0xa]]
    %s344 = sld [smem:[#allocation10 + $0xa]]
    %v345 = vstv %s344
    %v346 = vmul.f32 %v345, %v97
    %v347 = vmul.f32 %v345, %v98
    %s348 = sld [smem:[#allocation11 + $0xa]]
    %v349 = vstv %s348
    %v350 = vadd.f32 %v346, %v349
    %v351 = vadd.f32 %v347, %v349
    %v352 = vtanh.pop %v350
    %v353 = vtanh.pop %v351
    %v354 = vstv %s343
    %v355 = vmul.f32 %v354, %v352
    %v356 = vmul.f32 %v354, %v353
    %v357 = vadd.f32 %v341, %v355
    %v358 = vadd.f32 %v342, %v356
    %s359 = sld [smem:[#allocation13 + $0xb]]
    %s360 = sld [smem:[#allocation10 + $0xb]]
    %v361 = vstv %s360
    %v362 = vmul.f32 %v361, %v97
    %v363 = vmul.f32 %v361, %v98
    %s364 = sld [smem:[#allocation11 + $0xb]]
    %v365 = vstv %s364
    %v366 = vadd.f32 %v362, %v365
    %v367 = vadd.f32 %v363, %v365
    %v368 = vtanh.pop %v366
    %v369 = vtanh.pop %v367
    %v370 = vstv %s359
    %v371 = vmul.f32 %v370, %v368
    %v372 = vmul.f32 %v370, %v369
    %v373 = vadd.f32 %v357, %v371
    %v374 = vadd.f32 %v358, %v372
    %s375 = sld [smem:[#allocation13 + $0xc]]
    %s376 = sld [smem:[#allocation10 + $0xc]]
    %v377 = vstv %s376
    %v378 = vmul.f32 %v377, %v97
    %v379 = vmul.f32 %v377, %v98
    %s380 = sld [smem:[#allocation11 + $0xc]]
    %v381 = vstv %s380
    %v382 = vadd.f32 %v378, %v381
    %v383 = vadd.f32 %v379, %v381
    %v384 = vtanh.pop %v382
    %v385 = vtanh.pop %v383
    %v386 = vstv %s375
    %v387 = vmul.f32 %v386, %v384
    %v388 = vmul.f32 %v386, %v385
    %v389 = vadd.f32 %v373, %v387
    %v390 = vadd.f32 %v374, %v388
    %s391 = sld [smem:[#allocation13 + $0xd]]
    %s392 = sld [smem:[#allocation10 + $0xd]]
    %v393 = vstv %s392
    %v394 = vmul.f32 %v393, %v97
    %v395 = vmul.f32 %v393, %v98
    %s396 = sld [smem:[#allocation11 + $0xd]]
    %v397 = vstv %s396
    %v398 = vadd.f32 %v394, %v397
    %v399 = vadd.f32 %v395, %v397
    %v400 = vtanh.pop %v398
    %v401 = vtanh.pop %v399
    %v402 = vstv %s391
    %v403 = vmul.f32 %v402, %v400
    %v404 = vmul.f32 %v402, %v401
    %v405 = vadd.f32 %v389, %v403
    %v406 = vadd.f32 %v390, %v404
    %s407 = sld [smem:[#allocation13 + $0xe]]
    %s408 = sld [smem:[#allocation10 + $0xe]]
    %v409 = vstv %s408
    %v410 = vmul.f32 %v409, %v97
    %v411 = vmul.f32 %v409, %v98
    %s412 = sld [smem:[#allocation11 + $0xe]]
    %v413 = vstv %s412
    %v414 = vadd.f32 %v410, %v413
    %v415 = vadd.f32 %v411, %v413
    %v416 = vtanh.pop %v414
    %v417 = vtanh.pop %v415
    %v418 = vstv %s407
    %v419 = vmul.f32 %v418, %v416
    %v420 = vmul.f32 %v418, %v417
    %v421 = vadd.f32 %v405, %v419
    %v422 = vadd.f32 %v406, %v420
    %s423 = sld [smem:[#allocation13 + $0xf]]
    %s424 = sld [smem:[#allocation10 + $0xf]]
    %v425 = vstv %s424
    %v426 = vmul.f32 %v425, %v97
    %v427 = vmul.f32 %v425, %v98
    %s428 = sld [smem:[#allocation11 + $0xf]]
    %v429 = vstv %s428
    %v430 = vadd.f32 %v426, %v429
    %v431 = vadd.f32 %v427, %v429
    %v432 = vtanh.pop %v430
    %v433 = vtanh.pop %v431
    %v434 = vstv %s423
    %v435 = vmul.f32 %v434, %v432
    %v436 = vmul.f32 %v434, %v433
    %v437 = vadd.f32 %v421, %v435
    %v438 = vadd.f32 %v422, %v436
    %s439 = sld [smem:[#allocation13 + $0x10]]
    %s440 = sld [smem:[#allocation10 + $0x10]]
    %v441 = vstv %s440
    %v442 = vmul.f32 %v441, %v97
    %v443 = vmul.f32 %v441, %v98
    %s444 = sld [smem:[#allocation11 + $0x10]]
    %v445 = vstv %s444
    %v446 = vadd.f32 %v442, %v445
    %v447 = vadd.f32 %v443, %v445
    %v448 = vtanh.pop %v446
    %v449 = vtanh.pop %v447
    %v450 = vstv %s439
    %v451 = vmul.f32 %v450, %v448
    %v452 = vmul.f32 %v450, %v449
    %v453 = vadd.f32 %v437, %v451
    %v454 = vadd.f32 %v438, %v452
    %s455 = sld [smem:[#allocation13 + $0x11]]
    %s456 = sld [smem:[#allocation10 + $0x11]]
    %v457 = vstv %s456
    %v458 = vmul.f32 %v457, %v97
    %v459 = vmul.f32 %v457, %v98
    %s460 = sld [smem:[#allocation11 + $0x11]]
    %v461 = vstv %s460
    %v462 = vadd.f32 %v458, %v461
    %v463 = vadd.f32 %v459, %v461
    %v464 = vtanh.pop %v462
    %v465 = vtanh.pop %v463
    %v466 = vstv %s455
    %v467 = vmul.f32 %v466, %v464
    %v468 = vmul.f32 %v466, %v465
    %v469 = vadd.f32 %v453, %v467
    %v470 = vadd.f32 %v454, %v468
    %s471 = sld [smem:[#allocation13 + $0x12]]
    %s472 = sld [smem:[#allocation10 + $0x12]]
    %v473 = vstv %s472
    %v474 = vmul.f32 %v473, %v97
    %v475 = vmul.f32 %v473, %v98
    %s476 = sld [smem:[#allocation11 + $0x12]]
    %v477 = vstv %s476
    %v478 = vadd.f32 %v474, %v477
    %v479 = vadd.f32 %v475, %v477
    %v480 = vtanh.pop %v478
    %v481 = vtanh.pop %v479
    %v482 = vstv %s471
    %v483 = vmul.f32 %v482, %v480
    %v484 = vmul.f32 %v482, %v481
    %v485 = vadd.f32 %v469, %v483
    %v486 = vadd.f32 %v470, %v484
    %s487 = sld [smem:[#allocation13 + $0x13]]
    %s488 = sld [smem:[#allocation10 + $0x13]]
    %v489 = vstv %s488
    %v490 = vmul.f32 %v489, %v97
    %v491 = vmul.f32 %v489, %v98
    %s492 = sld [smem:[#allocation11 + $0x13]]
    %v493 = vstv %s492
    %v494 = vadd.f32 %v490, %v493
    %v495 = vadd.f32 %v491, %v493
    %v496 = vtanh.pop %v494
    %v497 = vtanh.pop %v495
    %v498 = vstv %s487
    %v499 = vmul.f32 %v498, %v496
    %v500 = vmul.f32 %v498, %v497
    %v501 = vadd.f32 %v485, %v499
    %v502 = vadd.f32 %v486, %v500
    %s503 = sld [smem:[#allocation13 + $0x14]]
    %s504 = sld [smem:[#allocation10 + $0x14]]
    %v505 = vstv %s504
    %v506 = vmul.f32 %v505, %v97
    %v507 = vmul.f32 %v505, %v98
    %s508 = sld [smem:[#allocation11 + $0x14]]
    %v509 = vstv %s508
    %v510 = vadd.f32 %v506, %v509
    %v511 = vadd.f32 %v507, %v509
    %v512 = vtanh.pop %v510
    %v513 = vtanh.pop %v511
    %v514 = vstv %s503
    %v515 = vmul.f32 %v514, %v512
    %v516 = vmul.f32 %v514, %v513
    %v517 = vadd.f32 %v501, %v515
    %v518 = vadd.f32 %v502, %v516
    %s519 = sld [smem:[#allocation13 + $0x15]]
    %s520 = sld [smem:[#allocation10 + $0x15]]
    %v521 = vstv %s520
    %v522 = vmul.f32 %v521, %v97
    %v523 = vmul.f32 %v521, %v98
    %s524 = sld [smem:[#allocation11 + $0x15]]
    %v525 = vstv %s524
    %v526 = vadd.f32 %v522, %v525
    %v527 = vadd.f32 %v523, %v525
    %v528 = vtanh.pop %v526
    %v529 = vtanh.pop %v527
    %v530 = vstv %s519
    %v531 = vmul.f32 %v530, %v528
    %v532 = vmul.f32 %v530, %v529
    %v533 = vadd.f32 %v517, %v531
    %v534 = vadd.f32 %v518, %v532
    %s535 = sld [smem:[#allocation13 + $0x16]]
    %s536 = sld [smem:[#allocation10 + $0x16]]
    %v537 = vstv %s536
    %v538 = vmul.f32 %v537, %v97
    %v539 = vmul.f32 %v537, %v98
    %s540 = sld [smem:[#allocation11 + $0x16]]
    %v541 = vstv %s540
    %v542 = vadd.f32 %v538, %v541
    %v543 = vadd.f32 %v539, %v541
    %v544 = vtanh.pop %v542
    %v545 = vtanh.pop %v543
    %v546 = vstv %s535
    %v547 = vmul.f32 %v546, %v544
    %v548 = vmul.f32 %v546, %v545
    %v549 = vadd.f32 %v533, %v547
    %v550 = vadd.f32 %v534, %v548
    %s551 = sld [smem:[#allocation13 + $0x17]]
    %s552 = sld [smem:[#allocation10 + $0x17]]
    %v553 = vstv %s552
    %v554 = vmul.f32 %v553, %v97
    %v555 = vmul.f32 %v553, %v98
    %s556 = sld [smem:[#allocation11 + $0x17]]
    %v557 = vstv %s556
    %v558 = vadd.f32 %v554, %v557
    %v559 = vadd.f32 %v555, %v557
    %v560 = vtanh.pop %v558
    %v561 = vtanh.pop %v559
    %v562 = vstv %s551
    %v563 = vmul.f32 %v562, %v560
    %v564 = vmul.f32 %v562, %v561
    %v565 = vadd.f32 %v549, %v563
    %v566 = vadd.f32 %v550, %v564
    %s567 = sld [smem:[#allocation13 + $0x18]]
    %s568 = sld [smem:[#allocation10 + $0x18]]
    %v569 = vstv %s568
    %v570 = vmul.f32 %v569, %v97
    %v571 = vmul.f32 %v569, %v98
    %s572 = sld [smem:[#allocation11 + $0x18]]
    %v573 = vstv %s572
    %v574 = vadd.f32 %v570, %v573
    %v575 = vadd.f32 %v571, %v573
    %v576 = vtanh.pop %v574
    %v577 = vtanh.pop %v575
    %v578 = vstv %s567
    %v579 = vmul.f32 %v578, %v576
    %v580 = vmul.f32 %v578, %v577
    %v581 = vadd.f32 %v565, %v579
    %v582 = vadd.f32 %v566, %v580
    %s583 = sld [smem:[#allocation13 + $0x19]]
    %s584 = sld [smem:[#allocation10 + $0x19]]
    %v585 = vstv %s584
    %v586 = vmul.f32 %v585, %v97
    %v587 = vmul.f32 %v585, %v98
    %s588 = sld [smem:[#allocation11 + $0x19]]
    %v589 = vstv %s588
    %v590 = vadd.f32 %v586, %v589
    %v591 = vadd.f32 %v587, %v589
    %v592 = vtanh.pop %v590
    %v593 = vtanh.pop %v591
    %v594 = vstv %s583
    %v595 = vmul.f32 %v594, %v592
    %v596 = vmul.f32 %v594, %v593
    %v597 = vadd.f32 %v581, %v595
    %v598 = vadd.f32 %v582, %v596
    %s599 = sld [smem:[#allocation13 + $0x1a]]
    %s600 = sld [smem:[#allocation10 + $0x1a]]
    %v601 = vstv %s600
    %v602 = vmul.f32 %v601, %v97
    %v603 = vmul.f32 %v601, %v98
    %s604 = sld [smem:[#allocation11 + $0x1a]]
    %v605 = vstv %s604
    %v606 = vadd.f32 %v602, %v605
    %v607 = vadd.f32 %v603, %v605
    %v608 = vtanh.pop %v606
    %v609 = vtanh.pop %v607
    %v610 = vstv %s599
    %v611 = vmul.f32 %v610, %v608
    %v612 = vmul.f32 %v610, %v609
    %v613 = vadd.f32 %v597, %v611
    %v614 = vadd.f32 %v598, %v612
    %s615 = sld [smem:[#allocation13 + $0x1b]]
    %s616 = sld [smem:[#allocation10 + $0x1b]]
    %v617 = vstv %s616
    %v618 = vmul.f32 %v617, %v97
    %v619 = vmul.f32 %v617, %v98
    %s620 = sld [smem:[#allocation11 + $0x1b]]
    %v621 = vstv %s620
    %v622 = vadd.f32 %v618, %v621
    %v623 = vadd.f32 %v619, %v621
    %v624 = vtanh.pop %v622
    %v625 = vtanh.pop %v623
    %v626 = vstv %s615
    %v627 = vmul.f32 %v626, %v624
    %v628 = vmul.f32 %v626, %v625
    %v629 = vadd.f32 %v613, %v627
    %v630 = vadd.f32 %v614, %v628
    %s631 = sld [smem:[#allocation13 + $0x1c]]
    %s632 = sld [smem:[#allocation10 + $0x1c]]
    %v633 = vstv %s632
    %v634 = vmul.f32 %v633, %v97
    %v635 = vmul.f32 %v633, %v98
    %s636 = sld [smem:[#allocation11 + $0x1c]]
    %v637 = vstv %s636
    %v638 = vadd.f32 %v634, %v637
    %v639 = vadd.f32 %v635, %v637
    %v640 = vtanh.pop %v638
    %v641 = vtanh.pop %v639
    %v642 = vstv %s631
    %v643 = vmul.f32 %v642, %v640
    %v644 = vmul.f32 %v642, %v641
    %v645 = vadd.f32 %v629, %v643
    %v646 = vadd.f32 %v630, %v644
    %s647 = sld [smem:[#allocation13 + $0x1d]]
    %s648 = sld [smem:[#allocation10 + $0x1d]]
    %v649 = vstv %s648
    %v650 = vmul.f32 %v649, %v97
    %v651 = vmul.f32 %v649, %v98
    %s652 = sld [smem:[#allocation11 + $0x1d]]
    %v653 = vstv %s652
    %v654 = vadd.f32 %v650, %v653
    %v655 = vadd.f32 %v651, %v653
    %v656 = vtanh.pop %v654
    %v657 = vtanh.pop %v655
    %v658 = vstv %s647
    %v659 = vmul.f32 %v658, %v656
    %v660 = vmul.f32 %v658, %v657
    %v661 = vadd.f32 %v645, %v659
    %v662 = vadd.f32 %v646, %v660
    %s663 = sld [smem:[#allocation13 + $0x1e]]
    %s664 = sld [smem:[#allocation10 + $0x1e]]
    %v665 = vstv %s664
    %v666 = vmul.f32 %v665, %v97
    %v667 = vmul.f32 %v665, %v98
    %s668 = sld [smem:[#allocation11 + $0x1e]]
    %v669 = vstv %s668
    %v670 = vadd.f32 %v666, %v669
    %v671 = vadd.f32 %v667, %v669
    %v672 = vtanh.pop %v670
    %v673 = vtanh.pop %v671
    %v674 = vstv %s663
    %v675 = vmul.f32 %v674, %v672
    %v676 = vmul.f32 %v674, %v673
    %v677 = vadd.f32 %v661, %v675
    %v678 = vadd.f32 %v662, %v676
    %s679 = sld [smem:[#allocation13 + $0x1f]]
    %s680 = sld [smem:[#allocation10 + $0x1f]]
    %v681 = vstv %s680
    %v682 = vmul.f32 %v681, %v97
    %v683 = vmul.f32 %v681, %v98
    %s684 = sld [smem:[#allocation11 + $0x1f]]
    %v685 = vstv %s684
    %v686 = vadd.f32 %v682, %v685
    %v687 = vadd.f32 %v683, %v685
    %v688 = vtanh.pop %v686
    %v689 = vtanh.pop %v687
    %v690 = vstv %s679
    %v691 = vmul.f32 %v690, %v688
    %v692 = vmul.f32 %v690, %v689
    %v693 = vadd.f32 %v677, %v691
    %v694 = vadd.f32 %v678, %v692
    %v695 = vmul.f32 %v693, 0.5
    %v696 = vmul.f32 %v694, 0.5
    %v697 = vtanh.pop %v695
    %v698 = vtanh.pop %v696
    %v699 = vadd.f32 %v697, 1.0
    %v700 = vadd.f32 %v698, 1.0
    %v701 = vmul.f32 %v699, 0.5
    %v702 = vmul.f32 %v700, 0.5
    %v703 = vmul.f32 %v701, 0.25
    %v704 = vmul.f32 %v702, 0.25
    %s705 = scalar_lea.vmem [#allocation8], 16
    %v706 = vld [vmem:[%s705] sm:$0xff]
    %v707 = vld [vmem:[%s705 + $0x8] sm:$0xff]
    %v708 = vmul.f32 %v132, %v703
    %v709 = vmul.f32 %v133, %v704
    %v710 = vmul.f32 %v136, %v703
    %v711 = vmul.f32 %v137, %v704
    %v712 = vsel %vm124, %v710, %v708
    %v713 = vsel %vm125, %v711, %v709
    %v714 = vmul.f32 %v142, %v703
    %v715 = vmul.f32 %v143, %v704
    %v716 = vsub.f32 %v97, %v706
    %v717 = vsub.f32 %v98, %v707
    %v718 = vmul.f32 %v716, 0.014705882
    %v719 = vmul.f32 %v717, 0.014705882
    %v720 = vsel %vm152, %v706, %v718
    %v721 = vsel %vm152, %v707, %v719
    %v722 = vsub.f32 %v720, %v97
    %v723 = vsub.f32 %v721, %v98
    %v724 = vmul.f32 %v722, %v703
    %v725 = vmul.f32 %v723, %v704
    %v726 = vsel %vm126, %v724, %v714
    %v727 = vsel %vm127, %v725, %v715
    %v728 = vadd.f32 %v712, %v726
    %v729 = vadd.f32 %v713, %v727
    %v730 = vmul.f32 %v163, %v703
    %v731 = vmul.f32 %v164, %v704
    %v732 = vsel %vm128, 0.0, %v730
    %v733 = vsel %vm128, 0.0, %v731
    %v734 = vadd.f32 %v728, %v732
    %v735 = vadd.f32 %v729, %v733
    %v736 = vmul.f32 %v171, %v703
    %v737 = vmul.f32 %v172, %v704
    %v738 = vsel %vm129, 0.0, %v736
    %v739 = vsel %vm129, 0.0, %v737
    %v740 = vadd.f32 %v734, %v738
    %v741 = vadd.f32 %v735, %v739
    %s742 = scalar_lea.vmem [#allocation14], 16
    %743 = vst [vmem:[%s742] sm:$0xff] %v740
    %744 = vst [vmem:[%s742 + $0x8] sm:$0xff] %v741
    // Predicated region
    $region50: #{tpu_custom_call.1} parent=1 // pred_check
      _
    $region51: #{tpu_custom_call.1} parent=1 // pred_check_branch
      %746 = sbr.rel (0) target = $region53
    $region52: #{tpu_custom_call.1} parent=1 // pred_region
      %748 = vsyncadd [#allocation6], 0
      %s749 = sshll.u32 [#allocation14], 4
      %s750 = int_to_ptr.vmem [resolvable:$true] %s749
      %s751 = sshll.u32 %s7, 4
      %s752 = int_to_ptr.hbm [resolvable:$true] %s751
      %757 = dma.vmem_to_hbm [thread:$0]  %s750, 512, %s752, [#allocation6], 128, 128, 8
    $region53: #{tpu_custom_call.1} parent=1 // pred_fallthru
      _
    // Predicated region
    $region54: #{tpu_custom_call.1} parent=1 // pred_check
      _
    $region55: #{tpu_custom_call.1} parent=1 // pred_check_branch
      %759 = sbr.rel (0) target = $region57
    $region56: #{tpu_custom_call.1} parent=1 // pred_region
      %761 = dma.done [#allocation6], 512
    $region57: #{tpu_custom_call.1} parent=1 // pred_fallthru
      _
    %762 = vsyncpa [#allocation5], 1
    %763 = vsyncpa [#allocation9], 1
    %764 = vsyncpa [#allocation6], 1
    %765 = vsyncpa [#allocation7], 1
    %766 = vsyncpa [#allocation12], 1

</llo_original>
